<compile_context>
chip_gen: v7x
topology: tpu7x:2x2x1
jax: 0.10.0
libtpu: 0.0.40
codegen_flags: <defaults>
</compile_context>

<pallas_src>
import functools
import math

import jax
import jax.numpy as jnp
from jax.experimental import pallas as pl
from jax.experimental.pallas import tpu as pltpu

_LANE = 128


def _round_down(x, m):
    return (x // m) * m


def _tversky_sums_rows_kernel(logits_ref, targets_ref, out_ref, acc_ref, *,
                              n_rows, tile_rows, apply_mask):
    """Blocks are (1, tile_rows, 128); accumulates lane-wise partial sums.

    acc_ref is (3, 128) f32: row 0 = sum(p*t), row 1 = sum(p), row 2 = sum(t).
    """
    r = pl.program_id(1)

    @pl.when(r == 0)
    def _():
        acc_ref[...] = jnp.zeros_like(acc_ref)

    x = logits_ref[...].astype(jnp.float32)
    t = targets_ref[...].astype(jnp.float32)
    p = jax.nn.sigmoid(x)

    if apply_mask:
        # Last row-tile may read past the array; zero out invalid rows.
        rows_left = n_rows - r * tile_rows
        row_id = jax.lax.broadcasted_iota(jnp.int32, x.shape, 1)
        valid = row_id < rows_left
        p = jnp.where(valid, p, 0.0)
        t = jnp.where(valid, t, 0.0)

    acc_ref[0:1, :] += jnp.sum(p * t, axis=1)   # true positives (lane partials)
    acc_ref[1:2, :] += jnp.sum(p, axis=1)       # sum(preds)
    acc_ref[2:3, :] += jnp.sum(t, axis=1)       # sum(targets)

    @pl.when(r == pl.num_programs(1) - 1)
    def _():
        out_ref[...] = acc_ref[...].reshape(1, 3, _LANE)


def _tversky_sums_flat_kernel(logits_ref, targets_ref, out_ref,
                              tp_ref, sp_ref, st_ref, *,
                              n_valid, tile_n, apply_mask):
    """Fallback (N % 128 != 0): blocks are (tb, tile_n) over the flat layout."""
    j = pl.program_id(1)

    @pl.when(j == 0)
    def _():
        tp_ref[...] = jnp.zeros_like(tp_ref)
        sp_ref[...] = jnp.zeros_like(sp_ref)
        st_ref[...] = jnp.zeros_like(st_ref)

    x = logits_ref[...].astype(jnp.float32)
    t = targets_ref[...].astype(jnp.float32)
    p = jax.nn.sigmoid(x)

    if apply_mask:
        lanes_left = n_valid - j * tile_n
        lane_id = jax.lax.broadcasted_iota(jnp.int32, x.shape, 1)
        valid = lane_id < lanes_left
        p = jnp.where(valid, p, 0.0)
        t = jnp.where(valid, t, 0.0)

    tp_ref[...] += jnp.sum(p * t, axis=1, keepdims=True)
    sp_ref[...] += jnp.sum(p, axis=1, keepdims=True)
    st_ref[...] += jnp.sum(t, axis=1, keepdims=True)

    @pl.when(j == pl.num_programs(1) - 1)
    def _():
        out_ref[:, 0:1] = tp_ref[...]
        out_ref[:, 1:2] = sp_ref[...]
        out_ref[:, 2:3] = st_ref[...]


def binary_tversky_loss_pallas(logits, targets, alpha=0.5, beta=0.5,
                               reduction="mean",
                               vmem_budget_bytes=4 * 1024 * 1024):
    """logits, targets: (B, H, W) (any trailing spatial dims).

    Returns a scalar for reduction in {'mean', 'sum'} or a (B,) vector for
    'none'.  `vmem_budget_bytes` caps the pipelined-input footprint
    (2 inputs x 2 pipeline buffers x tile); the 4 MiB default keeps ~1 MiB/step
    payloads (HBM-roofline territory) and fits v5e's 16 MiB scoped-VMEM default.
    """
    assert logits.shape == targets.shape, (logits.shape, targets.shape)
    B = logits.shape[0]
    N = math.prod(logits.shape[1:])

    if targets.dtype == jnp.bool_:
        targets = targets.astype(jnp.int8)   # keep HBM traffic narrow

    if N % _LANE == 0:
        # Dense layout: view each batch row as (R, 128) so sublanes are full
        # even for tiny B.  Reshape is metadata-only (no HBM rewrite).
        R = N // _LANE
        l3 = jnp.reshape(logits, (B, R, _LANE))
        t3 = jnp.reshape(targets, (B, R, _LANE))

        bytes_per_row = _LANE * (l3.dtype.itemsize + t3.dtype.itemsize)
        # 2 pipeline buffers of each input per grid step.
        tr_cap = max(8, _round_down(vmem_budget_bytes // (2 * bytes_per_row), 8))
        tile_rows = R if R <= tr_cap else tr_cap
        n_r = pl.cdiv(R, tile_rows)
        apply_mask = (R % tile_rows) != 0

        kernel = functools.partial(_tversky_sums_rows_kernel,
                                   n_rows=R, tile_rows=tile_rows,
                                   apply_mask=apply_mask)
        sums = pl.pallas_call(
            kernel,
            out_shape=jax.ShapeDtypeStruct((B, 3, _LANE), jnp.float32),
            grid_spec=pltpu.PrefetchScalarGridSpec(
                num_scalar_prefetch=0,
                grid=(B, n_r),
                in_specs=[
                    pl.BlockSpec((1, tile_rows, _LANE), lambda b, r: (b, r, 0)),
                    pl.BlockSpec((1, tile_rows, _LANE), lambda b, r: (b, r, 0)),
                ],
                out_specs=pl.BlockSpec((1, 3, _LANE), lambda b, r: (b, 0, 0)),
                scratch_shapes=[pltpu.VMEM((3, _LANE), jnp.float32)],
            ),
            compiler_params=pltpu.CompilerParams(
                dimension_semantics=("parallel", "arbitrary")),
        )(l3, t3)
        tp = jnp.sum(sums[:, 0, :], axis=-1)
        sp = jnp.sum(sums[:, 1, :], axis=-1)
        st = jnp.sum(sums[:, 2, :], axis=-1)
    else:
        # Fallback: tile the flat (B, N) layout along lanes; mask ragged tail
        # in-kernel (no jnp.pad, no extra HBM pass).
        l2 = jnp.reshape(logits, (B, N))
        t2 = jnp.reshape(targets, (B, N))

        tb = 8 if B % 8 == 0 else B
        n_b = B // tb
        padded_sub = ((max(tb, 8) + 7) // 8) * 8
        # 2 inputs x 2 buffers, <=4 B/elem after sublane padding.
        tn_cap = max(_LANE, _round_down(
            vmem_budget_bytes // (4 * padded_sub * 4), _LANE))
        tile_n = N if N <= tn_cap else tn_cap
        n_t = pl.cdiv(N, tile_n)
        apply_mask = (N % tile_n) != 0

        kernel = functools.partial(_tversky_sums_flat_kernel,
                                   n_valid=N, tile_n=tile_n,
                                   apply_mask=apply_mask)
        sums = pl.pallas_call(
            kernel,
            out_shape=jax.ShapeDtypeStruct((B, 3), jnp.float32),
            grid_spec=pltpu.PrefetchScalarGridSpec(
                num_scalar_prefetch=0,
                grid=(n_b, n_t),
                in_specs=[
                    pl.BlockSpec((tb, tile_n), lambda b, j: (b, j)),
                    pl.BlockSpec((tb, tile_n), lambda b, j: (b, j)),
                ],
                out_specs=pl.BlockSpec((tb, 3), lambda b, j: (b, 0)),
                scratch_shapes=[pltpu.VMEM((tb, 1), jnp.float32)] * 3,
            ),
            compiler_params=pltpu.CompilerParams(
                dimension_semantics=("parallel", "arbitrary")),
        )(l2, t2)
        tp, sp, st = sums[:, 0], sums[:, 1], sums[:, 2]

    # Tiny O(B) epilogue in JAX (matches the PyTorch module exactly).
    fp = sp - tp
    fn = st - tp
    loss = 1.0 - tp / (tp + alpha * fp + beta * fn + 0.1)
    if reduction == "none":
        return loss
    elif reduction == "sum":
        return jnp.sum(loss)
    return jnp.mean(loss)


def binary_tversky_loss_ref(logits, targets, alpha, beta, reduction="mean"):
    B = logits.shape[0]
    preds = jax.nn.sigmoid(logits.astype(jnp.float32)).reshape(B, -1)
    t = targets.reshape(B, -1).astype(jnp.float32)
    tp = jnp.sum(preds * t, axis=1)
    fp = jnp.sum(preds * (1.0 - t), axis=1)
    fn = jnp.sum((1.0 - preds) * t, axis=1)
    loss = 1.0 - tp / (tp + alpha * fp + beta * fn + 0.1)
    if reduction == "none":
        return loss
    elif reduction == "sum":
        return jnp.sum(loss)
    return jnp.mean(loss)


if __name__ == "__main__":
    key = jax.random.PRNGKey(0)
    ks = jax.random.split(key, 8)

    # 1) Main path (N % 128 == 0), float32, all reductions.
    B, H, W = 2, 16, 16
    logits = jax.random.normal(ks[0], (B, H, W), dtype=jnp.float32)
    targets = (jax.random.uniform(ks[1], (B, H, W)) > 0.5).astype(jnp.float32)
    for red in ("mean", "sum", "none"):
        out = jax.block_until_ready(
            binary_tversky_loss_pallas(logits, targets, 0.7, 0.3, red))
        ref = binary_tversky_loss_ref(logits, targets, 0.7, 0.3, red)
        assert jnp.allclose(out, ref, atol=1e-5, rtol=1e-5), (red, out, ref)

    # 2) Row-tiled path with ragged row tail (tiny budget forces multi-tile).
    B, H, W = 2, 40, 64          # N = 2560 -> R = 20 rows of 128
    logits = jax.random.normal(ks[2], (B, H, W), dtype=jnp.float32)
    targets = (jax.random.uniform(ks[3], (B, H, W)) > 0.3).astype(jnp.float32)
    out = jax.block_until_ready(
        binary_tversky_loss_pallas(logits, targets, 0.5, 0.5, "none",
                                   vmem_budget_bytes=32 * 1024))
    ref = binary_tversky_loss_ref(logits, targets, 0.5, 0.5, "none")
    assert jnp.allclose(out, ref, atol=1e-5, rtol=1e-5), (out, ref)

    # 3) Flat fallback path (N % 128 != 0) with a ragged lane tail.
    B, H, W = 3, 17, 19          # N = 323
    logits = jax.random.normal(ks[4], (B, H, W), dtype=jnp.float32)
    targets = (jax.random.uniform(ks[5], (B, H, W)) > 0.5).astype(jnp.float32)
    out = jax.block_until_ready(
        binary_tversky_loss_pallas(logits, targets, 0.3, 0.7, "mean",
                                   vmem_budget_bytes=32 * 1024))
    ref = binary_tversky_loss_ref(logits, targets, 0.3, 0.7, "mean")
    assert jnp.allclose(out, ref, atol=1e-5, rtol=1e-5), (out, ref)

    # 4) Narrow HBM dtypes pass straight through (bf16 logits, int8 targets).
    B, H, W = 2, 32, 64          # N = 2048 -> R = 16
    logits = jax.random.normal(ks[6], (B, H, W), dtype=jnp.bfloat16)
    targets = (jax.random.uniform(ks[7], (B, H, W)) > 0.5).astype(jnp.int8)
    out = jax.block_until_ready(
        binary_tversky_loss_pallas(logits, targets, 0.5, 0.5, "mean"))
    ref = binary_tversky_loss_ref(logits, targets, 0.5, 0.5, "mean")
    assert jnp.allclose(out, ref, atol=1e-5, rtol=1e-5), (out, ref)

    print("KERNEL_OK")
</pallas_src>

<mosaic_0001>
module attributes {stable_mosaic.version = 11 : i64} {
  func.func @_tversky_sums_rows_kernel(%arg0: i32, %arg1: i32, %arg2: memref<1x2x128xf32, #tpu.memory_space<vmem>>, %arg3: memref<1x2x128xf32, #tpu.memory_space<vmem>>, %arg4: memref<1x3x128xf32, #tpu.memory_space<vmem>>, %arg5: memref<3x128xf32, #tpu.memory_space<vmem>>) attributes {dimension_semantics = [#tpu.dimension_semantics<parallel>, #tpu.dimension_semantics<arbitrary>], iteration_bounds = array<i64: 2, 1>, scalar_prefetch = 0 : i64, scratch_operands = 1 : i64, tpu.core_type = #tpu.core_type<tc>, window_params = [{transform_indices = @transform_0, window_bounds = array<i64: 1, 2, 128>}, {transform_indices = @transform_1, window_bounds = array<i64: 1, 2, 128>}, {transform_indices = @transform_2, window_bounds = array<i64: 1, 3, 128>}]} {
    %c0_i32 = arith.constant 0 : i32
    %0 = arith.cmpi eq, %arg1, %c0_i32 : i32
    %1 = arith.extui %0 : i1 to i32
    %c0_i32_0 = arith.constant 0 : i32
    %2 = arith.cmpi ne, %1, %c0_i32_0 : i32
    scf.if %2 {
      %cst_21 = arith.constant 0.000000e+00 : f32
      %26 = vector.broadcast %cst_21 : f32 to vector<3x128xf32>
      %c0_22 = arith.constant 0 : index
      %c0_23 = arith.constant 0 : index
      %27 = vector.load %arg5[%c0_22, %c0_23] : memref<3x128xf32, #tpu.memory_space<vmem>>, vector<3x128xf32>
      tpu.vector_store %arg5[%c0_22, %c0_23], %26 {strides = array<i32>} : memref<3x128xf32, #tpu.memory_space<vmem>>, vector<3x128xf32>,
    } else {
    }
    %c0 = arith.constant 0 : index
    %c0_1 = arith.constant 0 : index
    %c0_2 = arith.constant 0 : index
    %3 = vector.load %arg2[%c0, %c0_1, %c0_2] : memref<1x2x128xf32, #tpu.memory_space<vmem>>, vector<1x2x128xf32>
    %c0_3 = arith.constant 0 : index
    %c0_4 = arith.constant 0 : index
    %c0_5 = arith.constant 0 : index
    %4 = vector.load %arg3[%c0_3, %c0_4, %c0_5] : memref<1x2x128xf32, #tpu.memory_space<vmem>>, vector<1x2x128xf32>
    %5 = arith.negf %3 : vector<1x2x128xf32>
    %6 = math.exp %5 : vector<1x2x128xf32>
    %cst = arith.constant 1.000000e+00 : f32
    %7 = vector.broadcast %cst : f32 to vector<1x2x128xf32>
    %8 = arith.addf %7, %6 : vector<1x2x128xf32>
    %9 = arith.divf %7, %8 : vector<1x2x128xf32>
    %c0_6 = arith.constant 0 : index
    %c0_7 = arith.constant 0 : index
    %10 = vector.load %arg5[%c0_6, %c0_7] : memref<3x128xf32, #tpu.memory_space<vmem>>, vector<1x128xf32>
    %11 = arith.mulf %9, %4 : vector<1x2x128xf32>
    %cst_8 = arith.constant dense<0.000000e+00> : vector<1x128xf32>
    %12 = vector.multi_reduction <add>, %11, %cst_8 [1] : vector<1x2x128xf32> to vector<1x128xf32>
    %13 = arith.addf %10, %12 : vector<1x128xf32>
    %c0_9 = arith.constant 0 : index
    %c0_10 = arith.constant 0 : index
    %14 = vector.load %arg5[%c0_9, %c0_10] : memref<3x128xf32, #tpu.memory_space<vmem>>, vector<1x128xf32>
    tpu.vector_store %arg5[%c0_9, %c0_10], %13 {strides = array<i32>} : memref<3x128xf32, #tpu.memory_space<vmem>>, vector<1x128xf32>,
    %c1 = arith.constant 1 : index
    %c0_11 = arith.constant 0 : index
    %15 = vector.load %arg5[%c1, %c0_11] : memref<3x128xf32, #tpu.memory_space<vmem>>, vector<1x128xf32>
    %cst_12 = arith.constant dense<0.000000e+00> : vector<1x128xf32>
    %16 = vector.multi_reduction <add>, %9, %cst_12 [1] : vector<1x2x128xf32> to vector<1x128xf32>
    %17 = arith.addf %15, %16 : vector<1x128xf32>
    %c1_13 = arith.constant 1 : index
    %c0_14 = arith.constant 0 : index
    %18 = vector.load %arg5[%c1_13, %c0_14] : memref<3x128xf32, #tpu.memory_space<vmem>>, vector<1x128xf32>
    tpu.vector_store %arg5[%c1_13, %c0_14], %17 {strides = array<i32>} : memref<3x128xf32, #tpu.memory_space<vmem>>, vector<1x128xf32>,
    %c2 = arith.constant 2 : index
    %c0_15 = arith.constant 0 : index
    %19 = vector.load %arg5[%c2, %c0_15] : memref<3x128xf32, #tpu.memory_space<vmem>>, vector<1x128xf32>
    %cst_16 = arith.constant dense<0.000000e+00> : vector<1x128xf32>
    %20 = vector.multi_reduction <add>, %4, %cst_16 [1] : vector<1x2x128xf32> to vector<1x128xf32>
    %21 = arith.addf %19, %20 : vector<1x128xf32>
    %c2_17 = arith.constant 2 : index
    %c0_18 = arith.constant 0 : index
    %22 = vector.load %arg5[%c2_17, %c0_18] : memref<3x128xf32, #tpu.memory_space<vmem>>, vector<1x128xf32>
    tpu.vector_store %arg5[%c2_17, %c0_18], %21 {strides = array<i32>} : memref<3x128xf32, #tpu.memory_space<vmem>>, vector<1x128xf32>,
    %c0_i32_19 = arith.constant 0 : i32
    %23 = arith.cmpi eq, %arg1, %c0_i32_19 : i32
    %24 = arith.extui %23 : i1 to i32
    %c0_i32_20 = arith.constant 0 : i32
    %25 = arith.cmpi ne, %24, %c0_i32_20 : i32
    scf.if %25 {
      %c0_21 = arith.constant 0 : index
      %c0_22 = arith.constant 0 : index
      %26 = vector.load %arg5[%c0_21, %c0_22] : memref<3x128xf32, #tpu.memory_space<vmem>>, vector<3x128xf32>
      %27 = vector.shape_cast %26 : vector<3x128xf32> to vector<1x3x128xf32>
      %c0_23 = arith.constant 0 : index
      %c0_24 = arith.constant 0 : index
      %c0_25 = arith.constant 0 : index
      %28 = vector.load %arg4[%c0_23, %c0_24, %c0_25] : memref<1x3x128xf32, #tpu.memory_space<vmem>>, vector<1x3x128xf32>
      tpu.vector_store %arg4[%c0_23, %c0_24, %c0_25], %27 {strides = array<i32>} : memref<1x3x128xf32, #tpu.memory_space<vmem>>, vector<1x3x128xf32>,
    } else {
    }
    return
  }
  func.func @transform_0(%arg0: i32, %arg1: i32) -> (i32, i32, i32) {
    %c0_i32 = arith.constant 0 : i32
    %c0_i32_0 = arith.constant 0 : i32
    return %arg0, %arg1, %c0_i32 : i32, i32, i32
  }
  func.func @transform_1(%arg0: i32, %arg1: i32) -> (i32, i32, i32) {
    %c0_i32 = arith.constant 0 : i32
    %c0_i32_0 = arith.constant 0 : i32
    return %arg0, %arg1, %c0_i32 : i32, i32, i32
  }
  func.func @transform_2(%arg0: i32, %arg1: i32) -> (i32, i32, i32) {
    %c0_i32 = arith.constant 0 : i32
    %c0_i32_0 = arith.constant 0 : i32
    %c0_i32_1 = arith.constant 0 : i32
    return %arg0, %c0_i32, %c0_i32_0 : i32, i32, i32
  }
}

</mosaic_0001>

<llo_original>
// kernel: tpu_custom_call.1
$region0: #{tpu_custom_call.1}
  #allocation0 [shape = 'u32[]', space=smem, size = 0x4, offset = 0x4, fixed_abs, tag = 'smem constant byte address 0x4 - core index']
  #allocation1 [shape = 'u32[144,128]{1,0:T(1,128)}', space=vmem, size = 0x12000, scoped, tag = 'internal scratch']
  #allocation2 [shape = 'f32[3,128]{1,0:T(4,128)}', space=vmem, size = 0x800, scoped, tag = 'scratch operand']
  %s0 = inlined_call_operand.hbm [shape: f32[2,2,128], index: 0, kind: input, shape index: {}]
  %s1 = inlined_call_operand.hbm [shape: f32[2,2,128], index: 1, kind: input, shape index: {}]
  %s2 = inlined_call_operand.vmem [shape: f32[2,3,128], index: 2, kind: output, shape index: {}]
  %s3 = sld [smem:[#allocation0]]
  $region57: #{tpu_custom_call.1} parent=0
    _
  %s5 = ssub.s32 1, %s3
  %s6 = scalar_select 0, %s5, %s3
  $region1: #{tpu_custom_call.1} parent=0
    #allocation3 [shape = 'u8[2048]{0}', space=vmem, size = 0x800, scoped, tag = 'input window, operand 0']
    #allocation4 [shape = 's32[2]{0}', space=sflag, size = 0x8, scoped, tag = 'scoped memory for tpu_custom_call.1']
    #allocation5 [shape = 'u8[2048]{0}', space=vmem, size = 0x800, scoped, tag = 'input window, operand 1']
    #allocation6 [shape = 's32[2]{0}', space=sflag, size = 0x8, scoped, tag = 'scoped memory for tpu_custom_call.1']
    %7 = vsyncpa [#allocation4], 0
    %s8 = scalar_lea.sflag [#allocation4], 1
    %9 = vsyncpa %s8, 0
    %10 = vsyncpa [#allocation6], 0
    %s11 = scalar_lea.sflag [#allocation6], 1
    %12 = vsyncpa %s11, 0
    loop: start=0, step=1, limit=4
    $region2: #{tpu_custom_call.1} parent=1 // loop_pre_header
      _
    $region3: #{tpu_custom_call.1} parent=1 // loop_header
      %s14 = sphi 0, %s18
      %p15 = scmp.ge.s32.totalorder %s14, 4
      %s21 = sphi 0, %s33
      %s22 = sphi 0, %s29
      %s23 = sphi 0, %s21
      %s24 = sphi 0, %s22
      %s25 = sphi 0, %s23
      %s26 = sphi 0, %s24
      %s38 = sphi 0, %s40
      %s41 = sphi 0, %s38
      %s42 = sphi 0, %s41
      %s58 = sphi 0, %s42
      %s66 = sphi 0, %s68
      %s69 = sphi 0, %s66
      %s70 = sphi 0, %s69
      %s86 = sphi 0, %s70
      %s92 = sphi 0, %s94
      %s95 = sphi 0, %s92
      %s96 = sphi 0, %s95
      %s112 = sphi 0, %s96
    $region4: #{tpu_custom_call.1} parent=1 // loop_header_branch
      %17 = sbr.rel (%p15) target = $region8
    $region5: #{tpu_custom_call.1} parent=1 // loop_body
      %s19 = ssub.s32 %s14, 1
      %s20 = ssub.s32 %s14, 2
      %s27 = sadd.s32 1, %s22
      %p28 = scmp.ge.s32.totalorder %s27, 1
      %s29 = scalar_select %p28, 0, %s27
      %s30 = sadd.s32 1, %s21
      %s31 = scalar_select %p28, %s30, %s21
      %p32 = scmp.ge.s32.totalorder %s31, 2
      %s33 = scalar_select %p32, 0, %s31
      %s34 = ssub.s32 %s21, %s33
      %s35 = ssub.s32 %s22, %s29
      %s36 = sor.u32 %s34, %s35
      %p37 = scmp.eq.s32.totalorder %s36, 0
      %s39 = sadd.s32 %s38, 1
      %s40 = scalar_select %p37, %s38, %s39
      %p43 = pneg %p37
      %p44 = scmp.eq.s32.totalorder %s14, 1
      %p45 = por %p43, %p44
      %p46 = scmp.ne.s32.totalorder %s38, %s41
      %p47 = scmp.eq.s32.totalorder %s14, 0
      %p48 = por %p46, %p47
      %p49 = scmp.ne.s32.totalorder %s38, %s41
      %p50 = scmp.eq.s32.totalorder %s19, 1
      %p51 = por %p49, %p50
      %p52 = scmp.ne.s32.totalorder %s41, %s42
      %p53 = scmp.eq.s32.totalorder %s19, 0
      %p54 = por %p52, %p53
      %p55 = scmp.ne.s32.totalorder %s41, %s42
      %p56 = scmp.eq.s32.totalorder %s20, 1
      %p57 = por %p55, %p56
      %p59 = scmp.ne.s32.totalorder %s42, %s58
      %p60 = scmp.eq.s32.totalorder %s20, 0
      %p61 = por %p59, %p60
      %s62 = ssub.s32 %s21, %s33
      %s63 = ssub.s32 %s22, %s29
      %s64 = sor.u32 %s62, %s63
      %p65 = scmp.eq.s32.totalorder %s64, 0
      %s67 = sadd.s32 %s66, 1
      %s68 = scalar_select %p65, %s66, %s67
      %p71 = pneg %p65
      %p72 = scmp.eq.s32.totalorder %s14, 1
      %p73 = por %p71, %p72
      %p74 = scmp.ne.s32.totalorder %s66, %s69
      %p75 = scmp.eq.s32.totalorder %s14, 0
      %p76 = por %p74, %p75
      %p77 = scmp.ne.s32.totalorder %s66, %s69
      %p78 = scmp.eq.s32.totalorder %s19, 1
      %p79 = por %p77, %p78
      %p80 = scmp.ne.s32.totalorder %s69, %s70
      %p81 = scmp.eq.s32.totalorder %s19, 0
      %p82 = por %p80, %p81
      %p83 = scmp.ne.s32.totalorder %s69, %s70
      %p84 = scmp.eq.s32.totalorder %s20, 1
      %p85 = por %p83, %p84
      %p87 = scmp.ne.s32.totalorder %s70, %s86
      %p88 = scmp.eq.s32.totalorder %s20, 0
      %p89 = por %p87, %p88
      %s90 = ssub.s32 %s21, %s33
      %p91 = scmp.eq.s32.totalorder %s90, 0
      %s93 = sadd.s32 %s92, 1
      %s94 = scalar_select %p91, %s92, %s93
      %p97 = pneg %p91
      %p98 = scmp.eq.s32.totalorder %s14, 1
      %p99 = por %p97, %p98
      %p100 = scmp.ne.s32.totalorder %s92, %s95
      %p101 = scmp.eq.s32.totalorder %s14, 0
      %p102 = por %p100, %p101
      %p103 = scmp.ne.s32.totalorder %s92, %s95
      %p104 = scmp.eq.s32.totalorder %s19, 1
      %p105 = por %p103, %p104
      %p106 = scmp.ne.s32.totalorder %s95, %s96
      %p107 = scmp.eq.s32.totalorder %s19, 0
      %p108 = por %p106, %p107
      %p109 = scmp.ne.s32.totalorder %s95, %s96
      %p110 = scmp.eq.s32.totalorder %s20, 1
      %p111 = por %p109, %p110
      %p113 = scmp.ne.s32.totalorder %s96, %s112
      %p114 = scmp.eq.s32.totalorder %s20, 0
      %p115 = por %p113, %p114
      %p116 = scmp.le.s32.totalorder 1, %s14
      %p117 = scmp.lt.s32.totalorder %s14, 3
      %p118 = pnand %p116, %p117
      %p119 = pneg %p118
      // Predicated region
      $region9: #{tpu_custom_call.1} parent=5 // pred_check
        _
      $region10: #{tpu_custom_call.1} parent=5 // pred_check_branch
        %121 = sbr.rel (%p118) target = $region12
      $region11: #{tpu_custom_call.1} parent=5 // pred_region
        %s122 = ssub.s32 %s14, 1
      $region12: #{tpu_custom_call.1} parent=5 // pred_fallthru
        _
      %p123 = scmp.lt.s32.totalorder %s14, 2
      // Predicated region
      $region13: #{tpu_custom_call.1} parent=5 // pred_check
        %p124 = pneg %p123
      $region14: #{tpu_custom_call.1} parent=5 // pred_check_branch
        %126 = sbr.rel (%p124) target = $region16
      $region15: #{tpu_custom_call.1} parent=5 // pred_region
        // Predicated region
        $region17: #{tpu_custom_call.1} parent=15 // pred_check
          %p127 = pneg %p48
        $region18: #{tpu_custom_call.1} parent=15 // pred_check_branch
          %129 = sbr.rel (%p127) target = $region20
        $region19: #{tpu_custom_call.1} parent=15 // pred_region
          %s130 = sand.u32 %s38, 1
          %s131 = scalar_lea.sflag [#allocation4], %s130
          %s132 = sand.u32 %s38, 1
          %s133 = smul.addr %s132, 2
          %s134 = scalar_lea.vmem [#allocation3], %s133
          %s136 = ssub.s32 32, 32
          %137 = vsyncadd %s131, %s136
          %s138 = sadd.s32 %s22, %s21
          %s139 = smul.addr %s138, 32
          %s140 = scalar_lea.hbm %s0, %s139
          %s142 = sshll.u32 %s134, 4
          %s143 = int_to_ptr.vmem [resolvable:$true] %s142
          %145 = dma.hbm_to_vmem [thread:$0]  %s140, 32, %s143, %s131
        $region20: #{tpu_custom_call.1} parent=15 // pred_fallthru
          _
        // Predicated region
        $region21: #{tpu_custom_call.1} parent=15 // pred_check
          %p146 = pneg %p76
        $region22: #{tpu_custom_call.1} parent=15 // pred_check_branch
          %148 = sbr.rel (%p146) target = $region24
        $region23: #{tpu_custom_call.1} parent=15 // pred_region
          %s149 = sand.u32 %s66, 1
          %s150 = scalar_lea.sflag [#allocation6], %s149
          %s151 = sand.u32 %s66, 1
          %s152 = smul.addr %s151, 2
          %s153 = scalar_lea.vmem [#allocation5], %s152
          %s155 = ssub.s32 32, 32
          %156 = vsyncadd %s150, %s155
          %s157 = sadd.s32 %s22, %s21
          %s158 = smul.addr %s157, 32
          %s159 = scalar_lea.hbm %s1, %s158
          %s161 = sshll.u32 %s153, 4
          %s162 = int_to_ptr.vmem [resolvable:$true] %s161
          %164 = dma.hbm_to_vmem [thread:$0]  %s159, 32, %s162, %s150
        $region24: #{tpu_custom_call.1} parent=15 // pred_fallthru
          _
      $region16: #{tpu_custom_call.1} parent=5 // pred_fallthru
        _
      %p165 = scmp.le.s32.totalorder 1, %s14
      %p166 = scmp.lt.s32.totalorder %s14, 3
      %p167 = pnand %p165, %p166
      %p168 = pneg %p167
      // Predicated region
      $region25: #{tpu_custom_call.1} parent=5 // pred_check
        _
      $region26: #{tpu_custom_call.1} parent=5 // pred_check_branch
        %170 = sbr.rel (%p167) target = $region28
      $region27: #{tpu_custom_call.1} parent=5 // pred_region
        %s171 = ssub.s32 %s14, 1
        %s172 = sand.u32 %s41, 1
        %s173 = scalar_lea.sflag [#allocation4], %s172
        %s174 = sand.u32 %s41, 1
        %s175 = smul.addr %s174, 2
        %s176 = scalar_lea.vmem [#allocation3], %s175
        // Predicated region
        $region29: #{tpu_custom_call.1} parent=27 // pred_check
          %p177 = pneg %p54
        $region30: #{tpu_custom_call.1} parent=27 // pred_check_branch
          %179 = sbr.rel (%p177) target = $region32
        $region31: #{tpu_custom_call.1} parent=27 // pred_region
          %180 = dma.done %s173, 32
        $region32: #{tpu_custom_call.1} parent=27 // pred_fallthru
          _
        %s181 = sand.u32 %s69, 1
        %s182 = scalar_lea.sflag [#allocation6], %s181
        %s183 = sand.u32 %s69, 1
        %s184 = smul.addr %s183, 2
        %s185 = scalar_lea.vmem [#allocation5], %s184
        // Predicated region
        $region33: #{tpu_custom_call.1} parent=27 // pred_check
          %p186 = pneg %p82
        $region34: #{tpu_custom_call.1} parent=27 // pred_check_branch
          %188 = sbr.rel (%p186) target = $region36
        $region35: #{tpu_custom_call.1} parent=27 // pred_region
          %189 = dma.done %s182, 32
        $region36: #{tpu_custom_call.1} parent=27 // pred_fallthru
          _
        %s190 = sand.u32 %s41, 1
        %s191 = scalar_lea.sflag [#allocation4], %s190
        %s192 = sand.u32 %s41, 1
        %s193 = smul.addr %s192, 2
        %s194 = scalar_lea.vmem [#allocation3], %s193
        %p195 = pneg %p54
        %p196 = pneg %p51
        %s197 = sand.u32 %s69, 1
        %s198 = scalar_lea.sflag [#allocation6], %s197
        %s199 = sand.u32 %s69, 1
        %s200 = smul.addr %s199, 2
        %s201 = scalar_lea.vmem [#allocation5], %s200
        %p202 = pneg %p82
        %p203 = pneg %p79
        %p204 = pneg %p108
        %p205 = pneg %p105
        %p206 = scmp.lt.s32.totalorder %s23, 1
        %s207 = scalar_select %p206, %s23, 1
        %s208 = smul.addr %s207, 4
        %s209 = scalar_lea.vmem %s2, %s208
        %p210 = scmp.lt.s32.totalorder %s23, 1
        %s211 = scalar_select %p210, %s23, 1
        %s212 = smul.addr %s211, 4
        %s213 = scalar_lea.vmem %s2, %s212
        %p214 = scmp.eq.s32.totalorder %s24, 0
        // Predicated region
        $region37: #{tpu_custom_call.1} parent=27 // pred_check
          %p215 = pneg %p214
        $region38: #{tpu_custom_call.1} parent=27 // pred_check_branch
          %217 = sbr.rel (%p215) target = $region40
        $region39: #{tpu_custom_call.1} parent=27 // pred_region
          %218 = vst [vmem:[#allocation2] sm:$0x7] 0.0
        $region40: #{tpu_custom_call.1} parent=27 // pred_fallthru
          _
        %v219 = vld [vmem:[%s176] sm:$0x3]
        %v220 = vld [vmem:[%s185] sm:$0x3]
        %v221 = vxor.u32 %v219, 2147483648
        %v222 = vmul.f32 %v221, 1.442695
        %v223 = vpow.pop %v222
        %v224 = vadd.f32 %v223, 1.0
        %v225 = vrcp.pop %v224
        %v226 = vmul.f32 1.0, %v225
        %v227 = vld [vmem:[#allocation2] sm:$0x1]
        %v228 = vmul.f32 %v226, %v220
        %vm229 = vcmask 1041408
        %v230 = vsel %vm229, %v228, 0.0
        %v231 = vrot.slane %v230, 4
        %v232 = vadd.f32 %v230, %v231
        %v233 = vrot.slane %v232, 2
        %v234 = vadd.f32 %v232, %v233
        %v235 = vrot.slane %v234, 1
        %v236 = vadd.f32 %v234, %v235
        %v237 = vadd.f32 %v227, %v236
        %238 = vst [vmem:[#allocation2] sm:$0x1] %v237
        %v239 = vld [vmem:[#allocation2 + $0x1] sm:$0x1]
        %v240 = vsel %vm229, %v226, 0.0
        %v241 = vrot.slane %v240, 4
        %v242 = vadd.f32 %v240, %v241
        %v243 = vrot.slane %v242, 2
        %v244 = vadd.f32 %v242, %v243
        %v245 = vrot.slane %v244, 1
        %v246 = vadd.f32 %v244, %v245
        %v247 = vadd.f32 %v239, %v246
        %248 = vst [vmem:[#allocation2 + $0x1] sm:$0x1] %v247
        %v249 = vld [vmem:[#allocation2 + $0x2] sm:$0x1]
        %v250 = vsel %vm229, %v220, 0.0
        %v251 = vrot.slane %v250, 4
        %v252 = vadd.f32 %v250, %v251
        %v253 = vrot.slane %v252, 2
        %v254 = vadd.f32 %v252, %v253
        %v255 = vrot.slane %v254, 1
        %v256 = vadd.f32 %v254, %v255
        %v257 = vadd.f32 %v249, %v256
        %258 = vst [vmem:[#allocation2 + $0x2] sm:$0x1] %v257
        // Predicated region
        $region41: #{tpu_custom_call.1} parent=27 // pred_check
          %p259 = pneg %p214
        $region42: #{tpu_custom_call.1} parent=27 // pred_check_branch
          %261 = sbr.rel (%p259) target = $region44
        $region43: #{tpu_custom_call.1} parent=27 // pred_region
          %v262 = vld [vmem:[#allocation2] sm:$0x7]
          %263 = vst [vmem:[%s213] sm:$0x7] %v262
        $region44: #{tpu_custom_call.1} parent=27 // pred_fallthru
          _
        %p264 = scmp.lt.s32.totalorder %s23, 1
        %s265 = scalar_select %p264, %s23, 1
        %s266 = smul.addr %s265, 4
        %s267 = scalar_lea.vmem %s2, %s266
        // Predicated region
        $region45: #{tpu_custom_call.1} parent=27 // pred_check
          %p268 = pneg %p105
        $region46: #{tpu_custom_call.1} parent=27 // pred_check_branch
          %270 = sbr.rel (%p268) target = $region48
        $region47: #{tpu_custom_call.1} parent=27 // pred_region
          _
        $region48: #{tpu_custom_call.1} parent=27 // pred_fallthru
          _
      $region28: #{tpu_custom_call.1} parent=5 // pred_fallthru
        _
      %p271 = scmp.le.s32.totalorder 2, %s14
      // Predicated region
      $region49: #{tpu_custom_call.1} parent=5 // pred_check
        %p272 = pneg %p271
      $region50: #{tpu_custom_call.1} parent=5 // pred_check_branch
        %274 = sbr.rel (%p272) target = $region52
      $region51: #{tpu_custom_call.1} parent=5 // pred_region
        %s275 = ssub.s32 %s14, 2
        // Predicated region
        $region53: #{tpu_custom_call.1} parent=51 // pred_check
          %p276 = pneg %p111
        $region54: #{tpu_custom_call.1} parent=51 // pred_check_branch
          %278 = sbr.rel (%p276) target = $region56
        $region55: #{tpu_custom_call.1} parent=51 // pred_region
          %p279 = scmp.lt.s32.totalorder %s25, 1
          %s280 = scalar_select %p279, %s25, 1
          %s281 = smul.addr %s280, 4
          %s282 = scalar_lea.vmem %s2, %s281
        $region56: #{tpu_custom_call.1} parent=51 // pred_fallthru
          _
      $region52: #{tpu_custom_call.1} parent=5 // pred_fallthru
        _
    $region6: #{tpu_custom_call.1} parent=1 // loop_footer
      %s18 = sadd.s32 1, %s14
    $region7: #{tpu_custom_call.1} parent=1 // loop_footer_branch
      %13 = sbr.rel target = $region3
    $region8: #{tpu_custom_call.1} parent=1 // loop_exit
      _
    %283 = vsyncpa [#allocation4], 1
    %s284 = scalar_lea.sflag [#allocation4], 1
    %285 = vsyncpa %s284, 1
    %286 = vsyncpa [#allocation6], 1
    %s287 = scalar_lea.sflag [#allocation6], 1
    %288 = vsyncpa %s287, 1

</llo_original>
